<compile_context>
chip_gen: v6e
topology: v6e:2x2x1
jax: 0.10.0
libtpu: 0.0.40
codegen_flags: <defaults>
</compile_context>

<pallas_src>
import math
import jax
import jax.numpy as jnp
from jax.experimental import pallas as pl
from jax.experimental.pallas import tpu as pltpu

LANE = 128
SUBLANE = 8
VMEM_LIMIT = 32 * 1024 * 1024


def _round_up(x, m):
    return (x + m - 1) // m * m


def _pad_to(a, shape):
    pads = [(0, s - d) for d, s in zip(a.shape, shape)]
    return jnp.pad(a, pads)


# ---------------------------------------------------------------------------
# Pallas kernels
# ---------------------------------------------------------------------------

def _linear_kernel(x_ref, w_ref, b_ref, o_ref):
    # o = x @ w + b   x:(M,K)  w:(K,tn)  b:(1,tn)  o:(M,tn)
    o_ref[...] = (
        jnp.dot(x_ref[...], w_ref[...], preferred_element_type=jnp.float32)
        + b_ref[...]
    )


def pallas_linear(x, w, b, *, tn=512):
    """x:(M,K) @ w:(K,N) + b:(1,N) -> (M,N), tiled along N."""
    M, K = x.shape
    N = w.shape[1]
    if N % tn != 0:
        tn = N
    return pl.pallas_call(
        _linear_kernel,
        out_shape=jax.ShapeDtypeStruct((M, N), jnp.float32),
        grid=(N // tn,),
        in_specs=[
            pl.BlockSpec((M, K), lambda j: (0, 0)),
            pl.BlockSpec((K, tn), lambda j: (0, j)),
            pl.BlockSpec((1, tn), lambda j: (0, j)),
        ],
        out_specs=pl.BlockSpec((M, tn), lambda j: (0, j)),
        compiler_params=pltpu.CompilerParams(
            dimension_semantics=("parallel",),
            vmem_limit_bytes=VMEM_LIMIT,
        ),
    )(x, w, b)


def _lstm_recurrence_kernel(xg_ref, whh_ref, h0_ref, c0_ref, y_ref,
                            h_scr, c_scr):
    # xg_ref : (T_chunk, B, 4H)  precomputed x @ W_ih + b
    # whh_ref: (H, 4H)
    # h0/c0  : (B, H)            used only on the first chunk
    # y_ref  : (T_chunk, B, H)
    @pl.when(pl.program_id(0) == 0)
    def _():
        h_scr[...] = h0_ref[...]
        c_scr[...] = c0_ref[...]

    Hp = h_scr.shape[1]
    t_chunk = xg_ref.shape[0]

    def step(t, carry):
        # Only the recurrent matmul lives on the serial critical path.
        gates = xg_ref[t] + jnp.dot(
            h_scr[...], whh_ref[...], preferred_element_type=jnp.float32
        )  # (B, 4H)
        # PyTorch LSTM gate order: input, forget, cell(g), output.
        # Hp is a multiple of 128 -> all slices are full-lane.
        i_g = jax.nn.sigmoid(gates[:, 0 * Hp:1 * Hp])
        f_g = jax.nn.sigmoid(gates[:, 1 * Hp:2 * Hp])
        g_g = jnp.tanh(gates[:, 2 * Hp:3 * Hp])
        o_g = jax.nn.sigmoid(gates[:, 3 * Hp:4 * Hp])
        c_new = f_g * c_scr[...] + i_g * g_g
        h_new = o_g * jnp.tanh(c_new)
        c_scr[...] = c_new
        h_scr[...] = h_new
        y_ref[t] = h_new
        return carry

    jax.lax.fori_loop(0, t_chunk, step, 0, unroll=(t_chunk <= 32))


def pallas_lstm_recurrence(xg, w_hh_t, h0, c0, t_chunk):
    """xg:(Tp,Bp,4Hp)  w_hh_t:(Hp,4Hp)  h0,c0:(Bp,Hp) -> y:(Tp,Bp,Hp)."""
    Tp, Bp, G = xg.shape
    Hp = h0.shape[1]
    return pl.pallas_call(
        _lstm_recurrence_kernel,
        out_shape=jax.ShapeDtypeStruct((Tp, Bp, Hp), jnp.float32),
        grid=(Tp // t_chunk,),
        in_specs=[
            pl.BlockSpec((t_chunk, Bp, G), lambda c: (c, 0, 0)),
            pl.BlockSpec((Hp, G), lambda c: (0, 0)),
            pl.BlockSpec((Bp, Hp), lambda c: (0, 0)),
            pl.BlockSpec((Bp, Hp), lambda c: (0, 0)),
        ],
        out_specs=pl.BlockSpec((t_chunk, Bp, Hp), lambda c: (c, 0, 0)),
        scratch_shapes=[
            pltpu.VMEM((Bp, Hp), jnp.float32),  # h carry
            pltpu.VMEM((Bp, Hp), jnp.float32),  # c carry
        ],
        compiler_params=pltpu.CompilerParams(
            # Recurrence over time must stay sequential (never "parallel").
            dimension_semantics=("arbitrary",),
            vmem_limit_bytes=VMEM_LIMIT,
        ),
    )(xg, w_hh_t, h0, c0)


# ---------------------------------------------------------------------------
# Parameter construction (deterministic, mirrors PyTorch inits)
# ---------------------------------------------------------------------------

def make_params(key, emb_dim, ninp, nhid, nlayers):
    params = {"init1": [], "init2": [], "lstm": []}
    stdv = 1.0 / math.sqrt(nhid)
    for l in range(nlayers):
        key, k1, k2, k3, k4 = jax.random.split(key, 5)
        params["init1"].append({
            "w": jax.random.uniform(k1, (nhid, ninp), jnp.float32, -0.1, 0.1),
            "b": jax.random.uniform(k2, (nhid,), jnp.float32, -0.5, 0.5),
        })
        params["init2"].append({
            "w": jax.random.uniform(k3, (nhid, ninp), jnp.float32, -0.1, 0.1),
            "b": jax.random.uniform(k4, (nhid,), jnp.float32, -0.5, 0.5),
        })
        in_size = emb_dim if l == 0 else nhid
        key, k5, k6, k7, k8 = jax.random.split(key, 5)
        params["lstm"].append({
            "w_ih": jax.random.uniform(k5, (4 * nhid, in_size), jnp.float32, -stdv, stdv),
            "w_hh": jax.random.uniform(k6, (4 * nhid, nhid), jnp.float32, -stdv, stdv),
            "b_ih": jax.random.uniform(k7, (4 * nhid,), jnp.float32, -stdv, stdv),
            "b_hh": jax.random.uniform(k8, (4 * nhid,), jnp.float32, -stdv, stdv),
        })
    return params


def prepare_params(params, emb_dim, ninp, nhid, nlayers):
    """One-time weight prep: transpose, combine biases, fuse init linears,
    and pad every gate block / feature dim to lane-aligned sizes."""
    H = nhid
    Hp = _round_up(H, LANE)
    Np = _round_up(ninp, LANE)
    Ep = _round_up(emb_dim, LANE)

    # All layers' init1/init2 fused into one (Np, nlayers*2*Hp) matmul.
    w_cols, b_cols = [], []
    for l in range(nlayers):
        for p in (params["init1"][l], params["init2"][l]):
            w_cols.append(_pad_to(p["w"], (Hp, Np)).T)      # (Np, Hp)
            b_cols.append(_pad_to(p["b"], (Hp,)))
    w_init = jnp.concatenate(w_cols, axis=1)                 # (Np, nlayers*2*Hp)
    b_init = jnp.concatenate(b_cols)[None, :]                # (1, nlayers*2*Hp)

    layers = []
    for l in range(nlayers):
        p = params["lstm"][l]
        Din = emb_dim if l == 0 else nhid
        Dp = Ep if l == 0 else Hp
        # Gate order i,f,g,o; pad each gate block to Hp columns (zeros are
        # exact no-ops for the real region and keep the padded h/c region 0).
        w_ih = _pad_to(p["w_ih"].reshape(4, H, Din), (4, Hp, Dp))
        w_ih_t = jnp.transpose(w_ih, (2, 0, 1)).reshape(Dp, 4 * Hp)
        w_hh = _pad_to(p["w_hh"].reshape(4, H, H), (4, Hp, Hp))
        w_hh_t = jnp.transpose(w_hh, (2, 0, 1)).reshape(Hp, 4 * Hp)
        b = _pad_to((p["b_ih"] + p["b_hh"]).reshape(4, H), (4, Hp)).reshape(1, 4 * Hp)
        layers.append({"w_ih_t": w_ih_t, "w_hh_t": w_hh_t, "b": b})

    return {"w_init": w_init, "b_init": b_init, "layers": layers,
            "H": H, "Hp": Hp, "Np": Np, "Ep": Ep, "nlayers": nlayers}


# ---------------------------------------------------------------------------
# RNN_decoder forward (Pallas-backed)
# ---------------------------------------------------------------------------

def rnn_decoder_forward(prep, input_init, emb, *, t_chunk=16):
    """input_init: (B, ninp), emb: (T, B, emb_dim) -> output: (T, B, nhid)."""
    T, B, _ = emb.shape
    H, Hp, Np, Ep = prep["H"], prep["Hp"], prep["Np"], prep["Ep"]
    nlayers = prep["nlayers"]

    Bp = _round_up(B, SUBLANE)
    t_chunk = min(t_chunk, T)
    Tp = _round_up(T, t_chunk)

    ii = _pad_to(input_init, (Bp, Np))
    x = _pad_to(emb, (Tp, Bp, Ep))

    # All layers' (h0, c0) in one MXU matmul (single kernel launch).
    hc0 = pallas_linear(ii, prep["w_init"], prep["b_init"])   # (Bp, nlayers*2*Hp)

    for l in range(nlayers):
        lp = prep["layers"][l]
        h0 = hc0[:, (2 * l) * Hp:(2 * l + 1) * Hp]
        c0 = hc0[:, (2 * l + 1) * Hp:(2 * l + 2) * Hp]
        Dp = x.shape[-1]
        # Hoisted input projection: one big matmul over all timesteps,
        # bias folded here (not re-added every recurrence step).
        xg = pallas_linear(x.reshape(Tp * Bp, Dp), lp["w_ih_t"], lp["b"])
        xg = xg.reshape(Tp, Bp, 4 * Hp)
        x = pallas_lstm_recurrence(xg, lp["w_hh_t"], h0, c0, t_chunk)

    return x[:T, :B, :H]


# ---------------------------------------------------------------------------
# Pure-JAX reference (for correctness check)
# ---------------------------------------------------------------------------

def rnn_decoder_reference(params, input_init, emb, nlayers):
    prec = jax.lax.Precision.HIGHEST
    x = emb
    for l in range(nlayers):
        p1 = params["init1"][l]
        p2 = params["init2"][l]
        h = jnp.dot(input_init, p1["w"].T, precision=prec) + p1["b"]
        c = jnp.dot(input_init, p2["w"].T, precision=prec) + p2["b"]
        pl_ = params["lstm"][l]
        w_ih, w_hh = pl_["w_ih"].T, pl_["w_hh"].T
        b = pl_["b_ih"] + pl_["b_hh"]
        H = h.shape[1]

        def step(carry, x_t):
            h, c = carry
            g = (jnp.dot(x_t, w_ih, precision=prec)
                 + jnp.dot(h, w_hh, precision=prec) + b)
            i_g = jax.nn.sigmoid(g[:, 0 * H:1 * H])
            f_g = jax.nn.sigmoid(g[:, 1 * H:2 * H])
            g_g = jnp.tanh(g[:, 2 * H:3 * H])
            o_g = jax.nn.sigmoid(g[:, 3 * H:4 * H])
            c = f_g * c + i_g * g_g
            h = o_g * jnp.tanh(c)
            return (h, c), h

        (_, _), ys = jax.lax.scan(step, (h, c), x)
        x = ys
    return x


# ---------------------------------------------------------------------------

if __name__ == "__main__":
    emb_dim, ninp, nhid, nlayers = 16, 16, 32, 2
    T, B = 8, 8

    key = jax.random.PRNGKey(0)
    kp, ki, ke = jax.random.split(key, 3)

    params = make_params(kp, emb_dim, ninp, nhid, nlayers)
    input_init = jax.random.normal(ki, (B, ninp), jnp.float32)
    emb = jax.random.normal(ke, (T, B, emb_dim), jnp.float32)

    prep = prepare_params(params, emb_dim, ninp, nhid, nlayers)

    out = rnn_decoder_forward(prep, input_init, emb)
    out = jax.block_until_ready(out)

    ref = rnn_decoder_reference(params, input_init, emb, nlayers)
    assert out.shape == (T, B, nhid), out.shape
    assert jnp.allclose(out, ref, atol=1e-4, rtol=1e-4), "mismatch vs reference"

    print("KERNEL_OK")
</pallas_src>

<mosaic_0001>
module attributes {stable_mosaic.version = 11 : i64} {
  func.func @_linear_kernel(%arg0: i32, %arg1: memref<8x128xf32, #tpu.memory_space<vmem>>, %arg2: memref<128x512xf32, #tpu.memory_space<vmem>>, %arg3: memref<1x512xf32, #tpu.memory_space<vmem>>, %arg4: memref<8x512xf32, #tpu.memory_space<vmem>>) attributes {dimension_semantics = [#tpu.dimension_semantics<parallel>], iteration_bounds = array<i64: 1>, scalar_prefetch = 0 : i64, scratch_operands = 0 : i64, tpu.core_type = #tpu.core_type<tc>, window_params = [{pipeline_mode = #tpu.pipeline_mode<synchronous>, transform_indices = @transform_0, window_bounds = array<i64: 8, 128>}, {transform_indices = @transform_1, window_bounds = array<i64: 128, 512>}, {transform_indices = @transform_2, window_bounds = array<i64: 1, 512>}, {transform_indices = @transform_3, window_bounds = array<i64: 8, 512>}]} {
    %c0 = arith.constant 0 : index
    %c0_0 = arith.constant 0 : index
    %0 = vector.load %arg1[%c0, %c0_0] : memref<8x128xf32, #tpu.memory_space<vmem>>, vector<8x128xf32>
    %c0_1 = arith.constant 0 : index
    %c0_2 = arith.constant 0 : index
    %1 = vector.load %arg2[%c0_1, %c0_2] : memref<128x512xf32, #tpu.memory_space<vmem>>, vector<128x512xf32>
    %cst = arith.constant dense<0.000000e+00> : vector<8x512xf32>
    %2 = tpu.matmul %0, %1, %cst {dimension_numbers = #tpu.dot_dimension_numbers<[1], [0], [0], [1], [0, 0, 1, 1], [], []>} : vector<8x128xf32>, vector<128x512xf32>, vector<8x512xf32> -> vector<8x512xf32>
    %c0_3 = arith.constant 0 : index
    %c0_4 = arith.constant 0 : index
    %3 = vector.load %arg3[%c0_3, %c0_4] : memref<1x512xf32, #tpu.memory_space<vmem>>, vector<1x512xf32>
    %4 = vector.broadcast %3 : vector<1x512xf32> to vector<8x512xf32>
    %5 = arith.addf %2, %4 : vector<8x512xf32>
    %c0_5 = arith.constant 0 : index
    %c0_6 = arith.constant 0 : index
    %6 = vector.load %arg4[%c0_5, %c0_6] : memref<8x512xf32, #tpu.memory_space<vmem>>, vector<8x512xf32>
    tpu.vector_store %arg4[%c0_5, %c0_6], %5 {strides = array<i32>} : memref<8x512xf32, #tpu.memory_space<vmem>>, vector<8x512xf32>,
    return
  }
  func.func @transform_0(%arg0: i32) -> (i32, i32) {
    %c0_i32 = arith.constant 0 : i32
    %c0_i32_0 = arith.constant 0 : i32
    %c0_i32_1 = arith.constant 0 : i32
    return %c0_i32, %c0_i32_0 : i32, i32
  }
  func.func @transform_1(%arg0: i32) -> (i32, i32) {
    %c0_i32 = arith.constant 0 : i32
    %c0_i32_0 = arith.constant 0 : i32
    return %c0_i32, %arg0 : i32, i32
  }
  func.func @transform_2(%arg0: i32) -> (i32, i32) {
    %c0_i32 = arith.constant 0 : i32
    %c0_i32_0 = arith.constant 0 : i32
    return %c0_i32, %arg0 : i32, i32
  }
  func.func @transform_3(%arg0: i32) -> (i32, i32) {
    %c0_i32 = arith.constant 0 : i32
    %c0_i32_0 = arith.constant 0 : i32
    return %c0_i32, %arg0 : i32, i32
  }
}

</mosaic_0001>

<llo_original>
// kernel: tpu_custom_call.1
$region0: #{tpu_custom_call.1}
  #allocation0 [shape = 'u32[]', space=smem, size = 0x4, offset = 0x4, fixed_abs, tag = 'smem constant byte address 0x4 - core index']
  #allocation1 [shape = 'u32[144,128]{1,0:T(1,128)}', space=vmem, size = 0x12000, scoped, tag = 'internal scratch']
  %s0 = inlined_call_operand.hbm [shape: f32[8,128], index: 0, kind: input, shape index: {}]
  %s1 = inlined_call_operand.hbm [shape: f32[128,512], index: 1, kind: input, shape index: {}]
  %s2 = inlined_call_operand.hbm [shape: f32[1,512], index: 2, kind: input, shape index: {}]
  %s3 = inlined_call_operand.hbm [shape: f32[8,512], index: 3, kind: output, shape index: {}]
  %s4 = sld [smem:[#allocation0]]
  $region34: #{tpu_custom_call.1} parent=0
    _
  %s6 = ssub.s32 1, %s4
  %s7 = scalar_select 0, %s6, %s4
  $region1: #{tpu_custom_call.1} parent=0
    #allocation2 [shape = 'u8[4096]{0}', space=vmem, size = 0x1000, scoped, tag = 'input window, operand 0, single buffered']
    #allocation3 [shape = 's32[1]{0}', space=sflag, size = 0x4, scoped, tag = 'scoped memory for tpu_custom_call.1']
    #allocation4 [shape = 's32[1]{0}', space=sflag, size = 0x4, scoped, tag = 'scoped memory for tpu_custom_call.1']
    #allocation5 [shape = 'u8[262144]{0}', space=vmem, size = 0x40000, scoped, tag = 'input window, operand 1, single buffered']
    #allocation6 [shape = 's32[1]{0}', space=sflag, size = 0x4, scoped, tag = 'scoped memory for tpu_custom_call.1']
    #allocation7 [shape = 'u8[2048]{0}', space=vmem, size = 0x800, scoped, tag = 'input window, operand 2, single buffered']
    #allocation8 [shape = 'u8[16384]{0}', space=vmem, size = 0x4000, scoped, tag = 'output window, operand 0, single buffered']
    %8 = vsyncpa [#allocation3], 0
    %9 = vsyncpa [#allocation6], 0
    %10 = vsyncpa [#allocation4], 0
    // Predicated region
    $region2: #{tpu_custom_call.1} parent=1 // pred_check
      _
    $region3: #{tpu_custom_call.1} parent=1 // pred_check_branch
      %12 = sbr.rel (0) target = $region5
    $region4: #{tpu_custom_call.1} parent=1 // pred_region
      %s14 = ssub.s32 128, 128
      %15 = vsyncadd [#allocation3], %s14
      %s17 = sshll.u32 [#allocation2], 4
      %s18 = int_to_ptr.vmem [resolvable:$true] %s17
      %20 = dma.hbm_to_vmem [thread:$0]  %s0, 128, %s18, [#allocation3]
    $region5: #{tpu_custom_call.1} parent=1 // pred_fallthru
      _
    // Predicated region
    $region6: #{tpu_custom_call.1} parent=1 // pred_check
      _
    $region7: #{tpu_custom_call.1} parent=1 // pred_check_branch
      %22 = sbr.rel (0) target = $region9
    $region8: #{tpu_custom_call.1} parent=1 // pred_region
      %s24 = ssub.s32 8192, 8192
      %25 = vsyncadd [#allocation6], %s24
      %s26 = sshll.u32 [#allocation5], 4
      %s27 = int_to_ptr.vmem [resolvable:$true] %s26
      %32 = dma.hbm_to_vmem [thread:$0]  %s1, 8192, %s27, [#allocation6], 512, 512, 32
    $region9: #{tpu_custom_call.1} parent=1 // pred_fallthru
      _
    // Predicated region
    $region10: #{tpu_custom_call.1} parent=1 // pred_check
      _
    $region11: #{tpu_custom_call.1} parent=1 // pred_check_branch
      %34 = sbr.rel (0) target = $region13
    $region12: #{tpu_custom_call.1} parent=1 // pred_region
      %s36 = ssub.s32 64, 64
      %37 = vsyncadd [#allocation6], %s36
      %s39 = sshll.u32 [#allocation7], 4
      %s40 = int_to_ptr.vmem [resolvable:$true] %s39
      %42 = dma.hbm_to_vmem [thread:$0]  %s2, 64, %s40, [#allocation6]
    $region13: #{tpu_custom_call.1} parent=1 // pred_fallthru
      _
    // Predicated region
    $region14: #{tpu_custom_call.1} parent=1 // pred_check
      _
    $region15: #{tpu_custom_call.1} parent=1 // pred_check_branch
      %44 = sbr.rel (0) target = $region17
    $region16: #{tpu_custom_call.1} parent=1 // pred_region
      %45 = dma.done [#allocation3], 128
    $region17: #{tpu_custom_call.1} parent=1 // pred_fallthru
      _
    // Predicated region
    $region18: #{tpu_custom_call.1} parent=1 // pred_check
      _
    $region19: #{tpu_custom_call.1} parent=1 // pred_check_branch
      %47 = sbr.rel (0) target = $region21
    $region20: #{tpu_custom_call.1} parent=1 // pred_region
      %48 = dma.done [#allocation6], 8192
    $region21: #{tpu_custom_call.1} parent=1 // pred_fallthru
      _
    // Predicated region
    $region22: #{tpu_custom_call.1} parent=1 // pred_check
      _
    $region23: #{tpu_custom_call.1} parent=1 // pred_check_branch
      %50 = sbr.rel (0) target = $region25
    $region24: #{tpu_custom_call.1} parent=1 // pred_region
      %51 = dma.done [#allocation6], 64
    $region25: #{tpu_custom_call.1} parent=1 // pred_fallthru
      _
    %v52 = vld [vmem:[#allocation2] sm:$0xff]
    %v53 = vld [vmem:[#allocation5] sm:$0xff]
    %v54 = vld [vmem:[#allocation5 + $0x8] sm:$0xff]
    %v55 = vld [vmem:[#allocation5 + $0x10] sm:$0xff]
    %v56 = vld [vmem:[#allocation5 + $0x18] sm:$0xff]
    %v57 = vld [vmem:[#allocation5 + $0x20] sm:$0xff]
    %v58 = vld [vmem:[#allocation5 + $0x28] sm:$0xff]
    %v59 = vld [vmem:[#allocation5 + $0x30] sm:$0xff]
    %v60 = vld [vmem:[#allocation5 + $0x38] sm:$0xff]
    %v61 = vld [vmem:[#allocation5 + $0x40] sm:$0xff]
    %v62 = vld [vmem:[#allocation5 + $0x48] sm:$0xff]
    %v63 = vld [vmem:[#allocation5 + $0x50] sm:$0xff]
    %v64 = vld [vmem:[#allocation5 + $0x58] sm:$0xff]
    %v65 = vld [vmem:[#allocation5 + $0x60] sm:$0xff]
    %v66 = vld [vmem:[#allocation5 + $0x68] sm:$0xff]
    %v67 = vld [vmem:[#allocation5 + $0x70] sm:$0xff]
    %v68 = vld [vmem:[#allocation5 + $0x78] sm:$0xff]
    %v69 = vld [vmem:[#allocation5 + $0x80] sm:$0xff]
    %v70 = vld [vmem:[#allocation5 + $0x88] sm:$0xff]
    %v71 = vld [vmem:[#allocation5 + $0x90] sm:$0xff]
    %v72 = vld [vmem:[#allocation5 + $0x98] sm:$0xff]
    %v73 = vld [vmem:[#allocation5 + $0xa0] sm:$0xff]
    %v74 = vld [vmem:[#allocation5 + $0xa8] sm:$0xff]
    %v75 = vld [vmem:[#allocation5 + $0xb0] sm:$0xff]
    %v76 = vld [vmem:[#allocation5 + $0xb8] sm:$0xff]
    %v77 = vld [vmem:[#allocation5 + $0xc0] sm:$0xff]
    %v78 = vld [vmem:[#allocation5 + $0xc8] sm:$0xff]
    %v79 = vld [vmem:[#allocation5 + $0xd0] sm:$0xff]
    %v80 = vld [vmem:[#allocation5 + $0xd8] sm:$0xff]
    %v81 = vld [vmem:[#allocation5 + $0xe0] sm:$0xff]
    %v82 = vld [vmem:[#allocation5 + $0xe8] sm:$0xff]
    %v83 = vld [vmem:[#allocation5 + $0xf0] sm:$0xff]
    %v84 = vld [vmem:[#allocation5 + $0xf8] sm:$0xff]
    %v85 = vld [vmem:[#allocation5 + $0x100] sm:$0xff]
    %v86 = vld [vmem:[#allocation5 + $0x108] sm:$0xff]
    %v87 = vld [vmem:[#allocation5 + $0x110] sm:$0xff]
    %v88 = vld [vmem:[#allocation5 + $0x118] sm:$0xff]
    %v89 = vld [vmem:[#allocation5 + $0x120] sm:$0xff]
    %v90 = vld [vmem:[#allocation5 + $0x128] sm:$0xff]
    %v91 = vld [vmem:[#allocation5 + $0x130] sm:$0xff]
    %v92 = vld [vmem:[#allocation5 + $0x138] sm:$0xff]
    %v93 = vld [vmem:[#allocation5 + $0x140] sm:$0xff]
    %v94 = vld [vmem:[#allocation5 + $0x148] sm:$0xff]
    %v95 = vld [vmem:[#allocation5 + $0x150] sm:$0xff]
    %v96 = vld [vmem:[#allocation5 + $0x158] sm:$0xff]
    %v97 = vld [vmem:[#allocation5 + $0x160] sm:$0xff]
    %v98 = vld [vmem:[#allocation5 + $0x168] sm:$0xff]
    %v99 = vld [vmem:[#allocation5 + $0x170] sm:$0xff]
    %v100 = vld [vmem:[#allocation5 + $0x178] sm:$0xff]
    %v101 = vld [vmem:[#allocation5 + $0x180] sm:$0xff]
    %v102 = vld [vmem:[#allocation5 + $0x188] sm:$0xff]
    %v103 = vld [vmem:[#allocation5 + $0x190] sm:$0xff]
    %v104 = vld [vmem:[#allocation5 + $0x198] sm:$0xff]
    %v105 = vld [vmem:[#allocation5 + $0x1a0] sm:$0xff]
    %v106 = vld [vmem:[#allocation5 + $0x1a8] sm:$0xff]
    %v107 = vld [vmem:[#allocation5 + $0x1b0] sm:$0xff]
    %v108 = vld [vmem:[#allocation5 + $0x1b8] sm:$0xff]
    %v109 = vld [vmem:[#allocation5 + $0x1c0] sm:$0xff]
    %v110 = vld [vmem:[#allocation5 + $0x1c8] sm:$0xff]
    %v111 = vld [vmem:[#allocation5 + $0x1d0] sm:$0xff]
    %v112 = vld [vmem:[#allocation5 + $0x1d8] sm:$0xff]
    %v113 = vld [vmem:[#allocation5 + $0x1e0] sm:$0xff]
    %v114 = vld [vmem:[#allocation5 + $0x1e8] sm:$0xff]
    %v115 = vld [vmem:[#allocation5 + $0x1f0] sm:$0xff]
    %v116 = vld [vmem:[#allocation5 + $0x1f8] sm:$0xff]
    %v117 = vld [vmem:[#allocation7] sm:$0xf]
    %v119 = vlaneseq
    %v120 = vshrl.u32 %v119, 7
    %v121 = vsub.s32 0, %v120
    %v122 = vrot.slane %v117, %v121
    %v123 = vlaneseq
    %v124 = vshrl.u32 %v123, 7
    %v125 = vsub.s32 1, %v124
    %v126 = vrot.slane %v117, %v125
    %v127 = vlaneseq
    %v128 = vshrl.u32 %v127, 7
    %v129 = vsub.s32 2, %v128
    %v130 = vrot.slane %v117, %v129
    %v131 = vlaneseq
    %v132 = vshrl.u32 %v131, 7
    %v133 = vsub.s32 3, %v132
    %v134 = vrot.slane %v117, %v133
    %139 = vmatprep.subr.mxu0 %v114
    %140 = vmatpush1.msra.mxu0 %v113
    %141 = vmatprep.subr.mxu0 %v110
    %142 = vmatpush1.msra.mxu0 %v109
    %143 = vmatprep.subr.mxu0 %v106
    %144 = vmatpush1.msra.mxu0 %v105
    %145 = vmatprep.subr.mxu0 %v102
    %146 = vmatpush1.msra.mxu0 %v101
    %147 = vmatprep.subr.mxu0 %v98
    %148 = vmatpush1.msra.mxu0 %v97
    %149 = vmatprep.subr.mxu0 %v94
    %150 = vmatpush1.msra.mxu0 %v93
    %151 = vmatprep.subr.mxu0 %v90
    %152 = vmatpush1.msra.mxu0 %v89
    %153 = vmatprep.subr.mxu0 %v86
    %154 = vmatpush1.msra.mxu0 %v85
    %155 = vmatprep.subr.mxu0 %v82
    %156 = vmatpush1.msra.mxu0 %v81
    %157 = vmatprep.subr.mxu0 %v78
    %158 = vmatpush1.msra.mxu0 %v77
    %159 = vmatprep.subr.mxu0 %v74
    %160 = vmatpush1.msra.mxu0 %v73
    %161 = vmatprep.subr.mxu0 %v70
    %162 = vmatpush1.msra.mxu0 %v69
    %163 = vmatprep.subr.mxu0 %v66
    %164 = vmatpush1.msra.mxu0 %v65
    %165 = vmatprep.subr.mxu0 %v62
    %166 = vmatpush1.msra.mxu0 %v61
    %167 = vmatprep.subr.mxu0 %v58
    %168 = vmatpush1.msra.mxu0 %v57
    %169 = vmatprep.subr.mxu0 %v54
    %170 = vmatpush1.msra.mxu0 %v53
    %171 = vmatprep.subr.mxu0 0.0
    %172 = vmatpush2.msra.mxu0 0.0
    %173 = vmatprep.subr.mxu0 0.0
    %174 = vmatpush2.msra.mxu0 0.0
    %175 = vmatprep.subr.mxu0 0.0
    %176 = vmatpush2.msra.mxu0 0.0
    %177 = vmatprep.subr.mxu0 0.0
    %178 = vmatpush2.msra.mxu0 0.0
    %179 = vmatprep.subr.mxu0 0.0
    %180 = vmatpush2.msra.mxu0 0.0
    %181 = vmatprep.subr.mxu0 0.0
    %182 = vmatpush2.msra.mxu0 0.0
    %183 = vmatprep.subr.mxu0 0.0
    %184 = vmatpush2.msra.mxu0 0.0
    %185 = vmatprep.subr.mxu0 0.0
    %186 = vmatpush2.msra.mxu0 0.0
    %187 = vmatprep.subr.mxu0 0.0
    %188 = vmatpush2.msra.mxu0 0.0
    %189 = vmatprep.subr.mxu0 0.0
    %190 = vmatpush2.msra.mxu0 0.0
    %191 = vmatprep.subr.mxu0 0.0
    %192 = vmatpush2.msra.mxu0 0.0
    %193 = vmatprep.subr.mxu0 0.0
    %194 = vmatpush2.msra.mxu0 0.0
    %195 = vmatprep.subr.mxu0 0.0
    %196 = vmatpush2.msra.mxu0 0.0
    %197 = vmatprep.subr.mxu0 0.0
    %198 = vmatpush2.msra.mxu0 0.0
    %199 = vmatprep.subr.mxu0 0.0
    %200 = vmatpush2.msra.mxu0 0.0
    %201 = vmatprep.subr.mxu0 0.0
    %202 = vmatpush2.msra.mxu0 0.0
    %203 = vmatprep.mubr.f32.mxu0 0.0
    %204 = vmatmul.mubr.f32.gmra.mxu0 %v52
    %v205 = vpop.f32.mrf.mxu0
    %v206 = vadd.f32 %v122, %v205
    %v207 = vpop.f32.mrf.mxu0
    %v208 = vadd.f32 %v126, %v207
    %209 = vdwg.mxu0
    %210 = vmatprep.subr.mxu0 %v116
    %211 = vmatpush1.msra.mxu0 %v115
    %212 = vmatprep.subr.mxu0 %v112
    %213 = vmatpush1.msra.mxu0 %v111
    %214 = vmatprep.subr.mxu0 %v108
    %215 = vmatpush1.msra.mxu0 %v107
    %216 = vmatprep.subr.mxu0 %v104
    %217 = vmatpush1.msra.mxu0 %v103
    %218 = vmatprep.subr.mxu0 %v100
    %219 = vmatpush1.msra.mxu0 %v99
    %220 = vmatprep.subr.mxu0 %v96
    %221 = vmatpush1.msra.mxu0 %v95
    %222 = vmatprep.subr.mxu0 %v92
    %223 = vmatpush1.msra.mxu0 %v91
    %224 = vmatprep.subr.mxu0 %v88
    %225 = vmatpush1.msra.mxu0 %v87
    %226 = vmatprep.subr.mxu0 %v84
    %227 = vmatpush1.msra.mxu0 %v83
    %228 = vmatprep.subr.mxu0 %v80
    %229 = vmatpush1.msra.mxu0 %v79
    %230 = vmatprep.subr.mxu0 %v76
    %231 = vmatpush1.msra.mxu0 %v75
    %232 = vmatprep.subr.mxu0 %v72
    %233 = vmatpush1.msra.mxu0 %v71
    %234 = vmatprep.subr.mxu0 %v68
    %235 = vmatpush1.msra.mxu0 %v67
    %236 = vmatprep.subr.mxu0 %v64
    %237 = vmatpush1.msra.mxu0 %v63
    %238 = vmatprep.subr.mxu0 %v60
    %239 = vmatpush1.msra.mxu0 %v59
    %240 = vmatprep.subr.mxu0 %v56
    %241 = vmatpush1.msra.mxu0 %v55
    %242 = vmatprep.subr.mxu0 0.0
    %243 = vmatpush2.msra.mxu0 0.0
    %244 = vmatprep.subr.mxu0 0.0
    %245 = vmatpush2.msra.mxu0 0.0
    %246 = vmatprep.subr.mxu0 0.0
    %247 = vmatpush2.msra.mxu0 0.0
    %248 = vmatprep.subr.mxu0 0.0
    %249 = vmatpush2.msra.mxu0 0.0
    %250 = vmatprep.subr.mxu0 0.0
    %251 = vmatpush2.msra.mxu0 0.0
    %252 = vmatprep.subr.mxu0 0.0
    %253 = vmatpush2.msra.mxu0 0.0
    %254 = vmatprep.subr.mxu0 0.0
    %255 = vmatpush2.msra.mxu0 0.0
    %256 = vmatprep.subr.mxu0 0.0
    %257 = vmatpush2.msra.mxu0 0.0
    %258 = vmatprep.subr.mxu0 0.0
    %259 = vmatpush2.msra.mxu0 0.0
    %260 = vmatprep.subr.mxu0 0.0
    %261 = vmatpush2.msra.mxu0 0.0
    %262 = vmatprep.subr.mxu0 0.0
    %263 = vmatpush2.msra.mxu0 0.0
    %264 = vmatprep.subr.mxu0 0.0
    %265 = vmatpush2.msra.mxu0 0.0
    %266 = vmatprep.subr.mxu0 0.0
    %267 = vmatpush2.msra.mxu0 0.0
    %268 = vmatprep.subr.mxu0 0.0
    %269 = vmatpush2.msra.mxu0 0.0
    %270 = vmatprep.subr.mxu0 0.0
    %271 = vmatpush2.msra.mxu0 0.0
    %272 = vmatprep.subr.mxu0 0.0
    %273 = vmatpush2.msra.mxu0 0.0
    %274 = vmatprep.mubr.f32.mxu0 0.0
    %275 = vmatmul.mubr.f32.gmra.mxu0 %v52
    %v276 = vpop.f32.mrf.mxu0
    %v277 = vadd.f32 %v130, %v276
    %v278 = vpop.f32.mrf.mxu0
    %v279 = vadd.f32 %v134, %v278
    %280 = vdwg.mxu0
    %281 = vst [vmem:[#allocation8] sm:$0xff] %v206
    %282 = vst [vmem:[#allocation8 + $0x8] sm:$0xff] %v208
    %283 = vst [vmem:[#allocation8 + $0x10] sm:$0xff] %v277
    %284 = vst [vmem:[#allocation8 + $0x18] sm:$0xff] %v279
    // Predicated region
    $region26: #{tpu_custom_call.1} parent=1 // pred_check
      _
    $region27: #{tpu_custom_call.1} parent=1 // pred_check_branch
      %286 = sbr.rel (0) target = $region29
    $region28: #{tpu_custom_call.1} parent=1 // pred_region
      %s288 = ssub.s32 512, 512
      %289 = vsyncadd [#allocation4], %s288
      %s291 = sshll.u32 [#allocation8], 4
      %s292 = int_to_ptr.vmem [resolvable:$true] %s291
      %294 = dma.vmem_to_hbm [thread:$0]  %s292, 512, %s3, [#allocation4]
    $region29: #{tpu_custom_call.1} parent=1 // pred_fallthru
      _
    // Predicated region
    $region30: #{tpu_custom_call.1} parent=1 // pred_check
      _
    $region31: #{tpu_custom_call.1} parent=1 // pred_check_branch
      %296 = sbr.rel (0) target = $region33
    $region32: #{tpu_custom_call.1} parent=1 // pred_region
      %297 = dma.done [#allocation4], 512
    $region33: #{tpu_custom_call.1} parent=1 // pred_fallthru
      _
    %298 = vsyncpa [#allocation3], 1
    %299 = vsyncpa [#allocation6], 1
    %300 = vsyncpa [#allocation4], 1

</llo_original>
